<compile_context>
chip_gen: v7x
topology: tpu7x:2x2x1
jax: 0.10.0
libtpu: 0.0.40
codegen_flags: <defaults>
</compile_context>

<pallas_src>
import functools

import jax
import jax.numpy as jnp
from jax.experimental import pallas as pl
from jax.experimental.pallas import tpu as pltpu


def _abs_triplet_kernel(anchor_ref, pos_ref, neg_ref,
                        loss_ref, negmean_ref, posmean_ref,
                        acc_ref,
                        *, a2, b2, w, batch, tile_rows, ragged):
    i = pl.program_id(0)
    nsteps = pl.num_programs(0)

    @pl.when(i == 0)
    def _():
        acc_ref[0] = jnp.float32(0.0)
        acc_ref[1] = jnp.float32(0.0)

    # Load the (TB, D) tiles, compute in f32 regardless of input dtype.
    anc = anchor_ref[...].astype(jnp.float32)
    pos = pos_ref[...].astype(jnp.float32)
    neg = neg_ref[...].astype(jnp.float32)

    # Squared euclidean distances, reduced over the feature dim.
    d_an = jnp.sum((anc - neg) ** 2, axis=1, keepdims=True)   # (TB, 1)
    d_ap = jnp.sum((anc - pos) ** 2, axis=1, keepdims=True)   # (TB, 1)
    d_pn = jnp.sum((pos - neg) ** 2, axis=1, keepdims=True)   # (TB, 1)

    neg_loss = jnp.maximum(jnp.maximum(a2 - d_an, 0.0),
                           jnp.maximum(a2 - d_pn, 0.0))
    pos_loss = jnp.maximum(d_ap - b2, 0.0)

    if ragged:
        # Mask rows of the padded last tile (padded contents are unspecified,
        # so use where() rather than multiply to be NaN-safe).
        row = jax.lax.broadcasted_iota(jnp.int32, (tile_rows, 1), 0) + i * tile_rows
        valid = row < batch
        zeros = jnp.zeros_like(neg_loss)
        neg_loss = jnp.where(valid, neg_loss, zeros)
        pos_loss = jnp.where(valid, pos_loss, zeros)

    # Accumulate partial sums across grid steps in SMEM scratch.
    acc_ref[0] = acc_ref[0] + jnp.sum(neg_loss)
    acc_ref[1] = acc_ref[1] + jnp.sum(pos_loss)

    @pl.when(i == nsteps - 1)
    def _():
        inv_b = jnp.float32(1.0 / batch)
        neg_mean = acc_ref[0] * inv_b
        pos_mean = acc_ref[1] * inv_b
        negmean_ref[0, 0] = neg_mean
        posmean_ref[0, 0] = pos_mean
        # mean(losses) == w * mean(neg_loss) + (1-w) * mean(pos_loss)
        loss_ref[0, 0] = jnp.float32(w) * neg_mean + jnp.float32(1.0 - w) * pos_mean


def _pick_tile_rows(batch, dim, itemsize):
    """Largest batch tile (multiple of 8) whose 3 double-buffered input
    streams fit a ~8 MiB budget (safe under every generation's scoped-VMEM
    default), capped at 1024 rows where the HBM roofline saturates."""
    budget = 8 * 1024 * 1024
    per_row = 3 * 2 * dim * itemsize           # 3 inputs x 2 pipeline buffers
    rows = max(8, min(1024, (budget // max(per_row, 1)) // 8 * 8))
    if rows >= batch:
        return batch                           # full-extent block is always legal
    return rows


def abs_triplet_loss(anchor, pos, neg, a=1.0, b=0.2, w=0.5, tile_rows=None):
    """Returns (loss_mean, neg_loss_mean, pos_loss_mean) as f32 scalars."""
    assert anchor.shape == pos.shape == neg.shape
    assert anchor.ndim == 2
    batch, dim = anchor.shape
    itemsize = jnp.dtype(anchor.dtype).itemsize

    if tile_rows is None:
        tile_rows = _pick_tile_rows(batch, dim, itemsize)
    tile_rows = int(tile_rows)
    grid = (pl.cdiv(batch, tile_rows),)
    ragged = (batch % tile_rows) != 0

    kernel = functools.partial(
        _abs_triplet_kernel,
        a2=float(a) ** 2, b2=float(b) ** 2, w=float(w),
        batch=batch, tile_rows=tile_rows, ragged=ragged)

    in_spec = pl.BlockSpec((tile_rows, dim), lambda i: (i, 0))
    scalar_out = jax.ShapeDtypeStruct((1, 1), jnp.float32)
    smem_out = pl.BlockSpec((1, 1), lambda i: (0, 0), memory_space=pltpu.SMEM)

    loss, neg_mean, pos_mean = pl.pallas_call(
        kernel,
        out_shape=(scalar_out, scalar_out, scalar_out),
        grid=grid,
        in_specs=[in_spec, in_spec, in_spec],
        out_specs=(smem_out, smem_out, smem_out),
        scratch_shapes=[pltpu.SMEM((2,), jnp.float32)],
        compiler_params=pltpu.CompilerParams(
            dimension_semantics=("arbitrary",)),   # accumulation across the grid
    )(anchor, pos, neg)

    return loss[0, 0], neg_mean[0, 0], pos_mean[0, 0]


def _reference(anchor, pos, neg, a=1.0, b=0.2, w=0.5):
    anchor = anchor.astype(jnp.float32)
    pos = pos.astype(jnp.float32)
    neg = neg.astype(jnp.float32)
    d_an = jnp.sum((anchor - neg) ** 2, axis=1)
    d_ap = jnp.sum((anchor - pos) ** 2, axis=1)
    d_pn = jnp.sum((pos - neg) ** 2, axis=1)
    neg_loss = jnp.maximum(jax.nn.relu(a * a - d_an), jax.nn.relu(a * a - d_pn))
    pos_loss = jax.nn.relu(d_ap - b * b)
    losses = w * neg_loss + (1.0 - w) * pos_loss
    return losses.mean(), neg_loss.mean(), pos_loss.mean()


if __name__ == "__main__":
    key = jax.random.PRNGKey(0)
    k1, k2, k3 = jax.random.split(key, 3)

    # Small shapes consistent with the module: batch=8, hidden=32.
    B, D = 8, 32
    anchor = jax.random.normal(k1, (B, D), dtype=jnp.float32)
    pos = anchor + 0.1 * jax.random.normal(k2, (B, D), dtype=jnp.float32)
    neg = jax.random.normal(k3, (B, D), dtype=jnp.float32)

    out = jax.block_until_ready(abs_triplet_loss(anchor, pos, neg, a=1.0, b=0.2, w=0.5))
    ref = _reference(anchor, pos, neg, a=1.0, b=0.2, w=0.5)
    for got, want in zip(out, ref):
        assert jnp.allclose(got, want, rtol=1e-5, atol=1e-5), (got, want)

    # Exercise the multi-tile + ragged-last-tile path (B=20 with 8-row tiles).
    B2, D2 = 20, 32
    k4, k5, k6 = jax.random.split(jax.random.PRNGKey(1), 3)
    anc2 = jax.random.normal(k4, (B2, D2), dtype=jnp.float32)
    pos2 = anc2 + 0.1 * jax.random.normal(k5, (B2, D2), dtype=jnp.float32)
    neg2 = jax.random.normal(k6, (B2, D2), dtype=jnp.float32)
    out2 = jax.block_until_ready(abs_triplet_loss(anc2, pos2, neg2, tile_rows=8))
    ref2 = _reference(anc2, pos2, neg2)
    for got, want in zip(out2, ref2):
        assert jnp.allclose(got, want, rtol=1e-5, atol=1e-5), (got, want)

    print("KERNEL_OK")
</pallas_src>

<mosaic_0001>
module attributes {stable_mosaic.version = 11 : i64} {
  func.func @_abs_triplet_kernel(%arg0: i32, %arg1: memref<8x32xf32, #tpu.memory_space<vmem>>, %arg2: memref<8x32xf32, #tpu.memory_space<vmem>>, %arg3: memref<8x32xf32, #tpu.memory_space<vmem>>, %arg4: memref<1x1xf32, #tpu.memory_space<smem>>, %arg5: memref<1x1xf32, #tpu.memory_space<smem>>, %arg6: memref<1x1xf32, #tpu.memory_space<smem>>, %arg7: memref<2xf32, #tpu.memory_space<smem>>) attributes {dimension_semantics = [#tpu.dimension_semantics<arbitrary>], iteration_bounds = array<i64: 1>, scalar_prefetch = 0 : i64, scratch_operands = 1 : i64, tpu.core_type = #tpu.core_type<tc>, window_params = [{transform_indices = @transform_0, window_bounds = array<i64: 8, 32>}, {transform_indices = @transform_1, window_bounds = array<i64: 8, 32>}, {transform_indices = @transform_2, window_bounds = array<i64: 8, 32>}, {transform_indices = @transform_3, window_bounds = array<i64: 1, 1>}, {transform_indices = @transform_4, window_bounds = array<i64: 1, 1>}, {transform_indices = @transform_5, window_bounds = array<i64: 1, 1>}]} {
    %c0_i32 = arith.constant 0 : i32
    %0 = arith.cmpi eq, %arg0, %c0_i32 : i32
    %1 = arith.extui %0 : i1 to i32
    %c0_i32_0 = arith.constant 0 : i32
    %2 = arith.cmpi ne, %1, %c0_i32_0 : i32
    scf.if %2 {
      %cst_21 = arith.constant 0.000000e+00 : f32
      %c0_22 = arith.constant 0 : index
      %48 = memref.load %arg7[%c0_22] : memref<2xf32, #tpu.memory_space<smem>>
      memref.store %cst_21, %arg7[%c0_22] : memref<2xf32, #tpu.memory_space<smem>>
      %cst_23 = arith.constant 0.000000e+00 : f32
      %c1_24 = arith.constant 1 : index
      %49 = memref.load %arg7[%c1_24] : memref<2xf32, #tpu.memory_space<smem>>
      memref.store %cst_23, %arg7[%c1_24] : memref<2xf32, #tpu.memory_space<smem>>
    } else {
    }
    %c0 = arith.constant 0 : index
    %c0_1 = arith.constant 0 : index
    %3 = vector.load %arg1[%c0, %c0_1] : memref<8x32xf32, #tpu.memory_space<vmem>>, vector<8x32xf32>
    %c0_2 = arith.constant 0 : index
    %c0_3 = arith.constant 0 : index
    %4 = vector.load %arg2[%c0_2, %c0_3] : memref<8x32xf32, #tpu.memory_space<vmem>>, vector<8x32xf32>
    %c0_4 = arith.constant 0 : index
    %c0_5 = arith.constant 0 : index
    %5 = vector.load %arg3[%c0_4, %c0_5] : memref<8x32xf32, #tpu.memory_space<vmem>>, vector<8x32xf32>
    %6 = arith.subf %3, %5 : vector<8x32xf32>
    %7 = arith.mulf %6, %6 : vector<8x32xf32>
    %cst = arith.constant dense<0.000000e+00> : vector<8xf32>
    %8 = vector.multi_reduction <add>, %7, %cst [1] : vector<8x32xf32> to vector<8xf32>
    %9 = vector.shape_cast %8 : vector<8xf32> to vector<8x1xf32>
    %10 = arith.subf %3, %4 : vector<8x32xf32>
    %11 = arith.mulf %10, %10 : vector<8x32xf32>
    %cst_6 = arith.constant dense<0.000000e+00> : vector<8xf32>
    %12 = vector.multi_reduction <add>, %11, %cst_6 [1] : vector<8x32xf32> to vector<8xf32>
    %13 = vector.shape_cast %12 : vector<8xf32> to vector<8x1xf32>
    %14 = arith.subf %4, %5 : vector<8x32xf32>
    %15 = arith.mulf %14, %14 : vector<8x32xf32>
    %cst_7 = arith.constant dense<0.000000e+00> : vector<8xf32>
    %16 = vector.multi_reduction <add>, %15, %cst_7 [1] : vector<8x32xf32> to vector<8xf32>
    %17 = vector.shape_cast %16 : vector<8xf32> to vector<8x1xf32>
    %cst_8 = arith.constant 1.000000e+00 : f32
    %18 = vector.broadcast %cst_8 : f32 to vector<8x1xf32>
    %19 = arith.subf %18, %9 : vector<8x1xf32>
    %cst_9 = arith.constant 0.000000e+00 : f32
    %20 = vector.broadcast %cst_9 : f32 to vector<8x1xf32>
    %21 = arith.maximumf %19, %20 : vector<8x1xf32>
    %cst_10 = arith.constant 1.000000e+00 : f32
    %22 = vector.broadcast %cst_10 : f32 to vector<8x1xf32>
    %23 = arith.subf %22, %17 : vector<8x1xf32>
    %cst_11 = arith.constant 0.000000e+00 : f32
    %24 = vector.broadcast %cst_11 : f32 to vector<8x1xf32>
    %25 = arith.maximumf %23, %24 : vector<8x1xf32>
    %26 = arith.maximumf %21, %25 : vector<8x1xf32>
    %cst_12 = arith.constant 4.000000e-02 : f32
    %27 = vector.broadcast %cst_12 : f32 to vector<8x1xf32>
    %28 = arith.subf %13, %27 : vector<8x1xf32>
    %cst_13 = arith.constant 0.000000e+00 : f32
    %29 = vector.broadcast %cst_13 : f32 to vector<8x1xf32>
    %30 = arith.maximumf %28, %29 : vector<8x1xf32>
    %c0_14 = arith.constant 0 : index
    %31 = memref.load %arg7[%c0_14] : memref<2xf32, #tpu.memory_space<smem>>
    %32 = vector.shape_cast %26 : vector<8x1xf32> to vector<1x8x1xf32>
    %cst_15 = arith.constant dense<0.000000e+00> : vector<1xf32>
    %33 = vector.multi_reduction <add>, %32, %cst_15 [1, 2] : vector<1x8x1xf32> to vector<1xf32>
    %34 = vector.shape_cast %33 : vector<1xf32> to vector<1x1x1xf32>
    %35 = vector.extract %34[0, 0, 0] : f32 from vector<1x1x1xf32>
    %36 = arith.addf %31, %35 : f32
    %c0_16 = arith.constant 0 : index
    %37 = memref.load %arg7[%c0_16] : memref<2xf32, #tpu.memory_space<smem>>
    memref.store %36, %arg7[%c0_16] : memref<2xf32, #tpu.memory_space<smem>>
    %c1 = arith.constant 1 : index
    %38 = memref.load %arg7[%c1] : memref<2xf32, #tpu.memory_space<smem>>
    %39 = vector.shape_cast %30 : vector<8x1xf32> to vector<1x8x1xf32>
    %cst_17 = arith.constant dense<0.000000e+00> : vector<1xf32>
    %40 = vector.multi_reduction <add>, %39, %cst_17 [1, 2] : vector<1x8x1xf32> to vector<1xf32>
    %41 = vector.shape_cast %40 : vector<1xf32> to vector<1x1x1xf32>
    %42 = vector.extract %41[0, 0, 0] : f32 from vector<1x1x1xf32>
    %43 = arith.addf %38, %42 : f32
    %c1_18 = arith.constant 1 : index
    %44 = memref.load %arg7[%c1_18] : memref<2xf32, #tpu.memory_space<smem>>
    memref.store %43, %arg7[%c1_18] : memref<2xf32, #tpu.memory_space<smem>>
    %c0_i32_19 = arith.constant 0 : i32
    %45 = arith.cmpi eq, %arg0, %c0_i32_19 : i32
    %46 = arith.extui %45 : i1 to i32
    %c0_i32_20 = arith.constant 0 : i32
    %47 = arith.cmpi ne, %46, %c0_i32_20 : i32
    scf.if %47 {
      %c0_21 = arith.constant 0 : index
      %48 = memref.load %arg7[%c0_21] : memref<2xf32, #tpu.memory_space<smem>>
      %cst_22 = arith.constant 1.250000e-01 : f32
      %49 = arith.mulf %48, %cst_22 : f32
      %c1_23 = arith.constant 1 : index
      %50 = memref.load %arg7[%c1_23] : memref<2xf32, #tpu.memory_space<smem>>
      %cst_24 = arith.constant 1.250000e-01 : f32
      %51 = arith.mulf %50, %cst_24 : f32
      %c0_25 = arith.constant 0 : index
      %c0_26 = arith.constant 0 : index
      %52 = memref.load %arg5[%c0_25, %c0_26] : memref<1x1xf32, #tpu.memory_space<smem>>
      memref.store %49, %arg5[%c0_25, %c0_26] : memref<1x1xf32, #tpu.memory_space<smem>>
      %c0_27 = arith.constant 0 : index
      %c0_28 = arith.constant 0 : index
      %53 = memref.load %arg6[%c0_27, %c0_28] : memref<1x1xf32, #tpu.memory_space<smem>>
      memref.store %51, %arg6[%c0_27, %c0_28] : memref<1x1xf32, #tpu.memory_space<smem>>
      %cst_29 = arith.constant 5.000000e-01 : f32
      %54 = arith.mulf %cst_29, %49 : f32
      %cst_30 = arith.constant 5.000000e-01 : f32
      %55 = arith.mulf %cst_30, %51 : f32
      %56 = arith.addf %54, %55 : f32
      %c0_31 = arith.constant 0 : index
      %c0_32 = arith.constant 0 : index
      %57 = memref.load %arg4[%c0_31, %c0_32] : memref<1x1xf32, #tpu.memory_space<smem>>
      memref.store %56, %arg4[%c0_31, %c0_32] : memref<1x1xf32, #tpu.memory_space<smem>>
    } else {
    }
    return
  }
  func.func @transform_0(%arg0: i32) -> (i32, i32) {
    %c0_i32 = arith.constant 0 : i32
    %c0_i32_0 = arith.constant 0 : i32
    return %arg0, %c0_i32 : i32, i32
  }
  func.func @transform_1(%arg0: i32) -> (i32, i32) {
    %c0_i32 = arith.constant 0 : i32
    %c0_i32_0 = arith.constant 0 : i32
    return %arg0, %c0_i32 : i32, i32
  }
  func.func @transform_2(%arg0: i32) -> (i32, i32) {
    %c0_i32 = arith.constant 0 : i32
    %c0_i32_0 = arith.constant 0 : i32
    return %arg0, %c0_i32 : i32, i32
  }
  func.func @transform_3(%arg0: i32) -> (i32, i32) {
    %c0_i32 = arith.constant 0 : i32
    %c0_i32_0 = arith.constant 0 : i32
    %c0_i32_1 = arith.constant 0 : i32
    return %c0_i32, %c0_i32_0 : i32, i32
  }
  func.func @transform_4(%arg0: i32) -> (i32, i32) {
    %c0_i32 = arith.constant 0 : i32
    %c0_i32_0 = arith.constant 0 : i32
    %c0_i32_1 = arith.constant 0 : i32
    return %c0_i32, %c0_i32_0 : i32, i32
  }
  func.func @transform_5(%arg0: i32) -> (i32, i32) {
    %c0_i32 = arith.constant 0 : i32
    %c0_i32_0 = arith.constant 0 : i32
    %c0_i32_1 = arith.constant 0 : i32
    return %c0_i32, %c0_i32_0 : i32, i32
  }
}

</mosaic_0001>

<llo_original>
// kernel: tpu_custom_call.1
$region0: #{tpu_custom_call.1}
  #allocation0 [shape = 'u32[]', space=smem, size = 0x4, offset = 0x4, fixed_abs, tag = 'smem constant byte address 0x4 - core index']
  #allocation1 [shape = 'u32[144,128]{1,0:T(1,128)}', space=vmem, size = 0x12000, scoped, tag = 'internal scratch']
  #allocation2 [shape = 'f32[2]{0:T(128)}', space=smem, size = 0x200, scoped, tag = 'scratch operand']
  %s0 = inlined_call_operand.hbm [shape: f32[8,32], index: 0, kind: input, shape index: {}]
  %s1 = inlined_call_operand.hbm [shape: f32[8,32], index: 1, kind: input, shape index: {}]
  %s2 = inlined_call_operand.hbm [shape: f32[8,32], index: 2, kind: input, shape index: {}]
  %s3 = inlined_call_operand.hbm [shape: f32[1,1], index: 3, kind: output, shape index: {0}]
  %s4 = inlined_call_operand.hbm [shape: f32[1,1], index: 4, kind: output, shape index: {1}]
  %s5 = inlined_call_operand.hbm [shape: f32[1,1], index: 5, kind: output, shape index: {2}]
  %6 = xla_tuple %s3, %s4, %s5
  %s7 = sld [smem:[#allocation0]]
  $region58: #{tpu_custom_call.1} parent=0
    _
  %s9 = ssub.s32 1, %s7
  %s10 = scalar_select 0, %s9, %s7
  $region1: #{tpu_custom_call.1} parent=0
    #allocation3 [shape = 'u8[4096]{0}', space=vmem, size = 0x1000, scoped, tag = 'input window, operand 0, single buffered']
    #allocation4 [shape = 's32[1]{0}', space=sflag, size = 0x4, scoped, tag = 'scoped memory for tpu_custom_call.1']
    #allocation5 [shape = 's32[1]{0}', space=sflag, size = 0x4, scoped, tag = 'scoped memory for tpu_custom_call.1']
    #allocation6 [shape = 'u8[4096]{0}', space=vmem, size = 0x1000, scoped, tag = 'input window, operand 1, single buffered']
    #allocation7 [shape = 's32[1]{0}', space=sflag, size = 0x4, scoped, tag = 'scoped memory for tpu_custom_call.1']
    #allocation8 [shape = 'u8[4096]{0}', space=vmem, size = 0x1000, scoped, tag = 'input window, operand 2, single buffered']
    #allocation9 [shape = 'u8[512]{0}', space=smem, size = 0x200, scoped, tag = 'output window, operand 0, single buffered']
    #allocation10 [shape = 'u8[512]{0}', space=smem, size = 0x200, scoped, tag = 'output window, operand 1, single buffered']
    #allocation11 [shape = 's32[1]{0}', space=sflag, size = 0x4, scoped, tag = 'scoped memory for tpu_custom_call.1']
    #allocation12 [shape = 'u8[512]{0}', space=smem, size = 0x200, scoped, tag = 'output window, operand 2, single buffered']
    %11 = vsyncpa [#allocation4], 0
    %12 = vsyncpa [#allocation7], 0
    %13 = vsyncpa [#allocation5], 0
    %14 = vsyncpa [#allocation11], 0
    // Predicated region
    $region2: #{tpu_custom_call.1} parent=1 // pred_check
      _
    $region3: #{tpu_custom_call.1} parent=1 // pred_check_branch
      %16 = sbr.rel (0) target = $region5
    $region4: #{tpu_custom_call.1} parent=1 // pred_region
      %s18 = ssub.s32 128, 128
      %19 = vsyncadd [#allocation4], %s18
      %s21 = sshll.u32 [#allocation3], 4
      %s22 = int_to_ptr.vmem [resolvable:$true] %s21
      %24 = dma.hbm_to_vmem [thread:$0]  %s0, 128, %s22, [#allocation4]
    $region5: #{tpu_custom_call.1} parent=1 // pred_fallthru
      _
    // Predicated region
    $region6: #{tpu_custom_call.1} parent=1 // pred_check
      _
    $region7: #{tpu_custom_call.1} parent=1 // pred_check_branch
      %26 = sbr.rel (0) target = $region9
    $region8: #{tpu_custom_call.1} parent=1 // pred_region
      %s28 = ssub.s32 128, 128
      %29 = vsyncadd [#allocation7], %s28
      %s31 = sshll.u32 [#allocation6], 4
      %s32 = int_to_ptr.vmem [resolvable:$true] %s31
      %34 = dma.hbm_to_vmem [thread:$0]  %s1, 128, %s32, [#allocation7]
    $region9: #{tpu_custom_call.1} parent=1 // pred_fallthru
      _
    // Predicated region
    $region10: #{tpu_custom_call.1} parent=1 // pred_check
      _
    $region11: #{tpu_custom_call.1} parent=1 // pred_check_branch
      %36 = sbr.rel (0) target = $region13
    $region12: #{tpu_custom_call.1} parent=1 // pred_region
      %s38 = ssub.s32 128, 128
      %39 = vsyncadd [#allocation7], %s38
      %s41 = sshll.u32 [#allocation8], 4
      %s42 = int_to_ptr.vmem [resolvable:$true] %s41
      %44 = dma.hbm_to_vmem [thread:$0]  %s2, 128, %s42, [#allocation7]
    $region13: #{tpu_custom_call.1} parent=1 // pred_fallthru
      _
    // Predicated region
    $region14: #{tpu_custom_call.1} parent=1 // pred_check
      _
    $region15: #{tpu_custom_call.1} parent=1 // pred_check_branch
      %46 = sbr.rel (0) target = $region17
    $region16: #{tpu_custom_call.1} parent=1 // pred_region
      %47 = dma.done [#allocation4], 128
    $region17: #{tpu_custom_call.1} parent=1 // pred_fallthru
      _
    // Predicated region
    $region18: #{tpu_custom_call.1} parent=1 // pred_check
      _
    $region19: #{tpu_custom_call.1} parent=1 // pred_check_branch
      %49 = sbr.rel (0) target = $region21
    $region20: #{tpu_custom_call.1} parent=1 // pred_region
      %50 = dma.done [#allocation7], 128
    $region21: #{tpu_custom_call.1} parent=1 // pred_fallthru
      _
    // Predicated region
    $region22: #{tpu_custom_call.1} parent=1 // pred_check
      _
    $region23: #{tpu_custom_call.1} parent=1 // pred_check_branch
      %52 = sbr.rel (0) target = $region25
    $region24: #{tpu_custom_call.1} parent=1 // pred_region
      %53 = dma.done [#allocation7], 128
    $region25: #{tpu_custom_call.1} parent=1 // pred_fallthru
      _
    %p54 = scmp.eq.s32.totalorder 0, 0
    // Predicated region
    $region26: #{tpu_custom_call.1} parent=1 // pred_check
      %p55 = pneg %p54
    $region27: #{tpu_custom_call.1} parent=1 // pred_check_branch
      %57 = sbr.rel (%p55) target = $region29
    $region28: #{tpu_custom_call.1} parent=1 // pred_region
      %s58 = scalar_lea.smem [#allocation2], 0
      %59 = sst [smem:[%s58]] 0.0
      %s60 = scalar_lea.smem [#allocation2], 1
      %61 = sst [smem:[%s60]] 0.0
    $region29: #{tpu_custom_call.1} parent=1 // pred_fallthru
      _
    %v62 = vld [vmem:[#allocation3] sm:$0xff]
    %v63 = vld [vmem:[#allocation6] sm:$0xff]
    %v64 = vld [vmem:[#allocation8] sm:$0xff]
    %v65 = vsub.f32 %v62, %v64
    %v66 = vmul.f32 %v65, %v65
    %vm67 = vcmask 261120
    %v68 = vsel %vm67, %v66, 0.0
    %69 = vadd.xlane.f32.xlu0 %v68
    %v70 = vpop.xlane.xlu0 %69
    %v71 = vsub.f32 %v62, %v63
    %v72 = vmul.f32 %v71, %v71
    %v73 = vsel %vm67, %v72, 0.0
    %74 = vadd.xlane.f32.xlu0 %v73
    %v75 = vpop.xlane.xlu0 %74
    %v76 = vsub.f32 %v63, %v64
    %v77 = vmul.f32 %v76, %v76
    %v78 = vsel %vm67, %v77, 0.0
    %79 = vadd.xlane.f32.xlu0 %v78
    %v80 = vpop.xlane.xlu0 %79
    %v81 = vsub.f32 1.0, %v70
    %v82 = vmax.f32 %v81, 0.0
    %v83 = vsub.f32 1.0, %v80
    %v84 = vmax.f32 %v83, 0.0
    %v85 = vmax.f32 %v82, %v84
    %v86 = vsub.f32 %v75, 0.04
    %v87 = vmax.f32 %v86, 0.0
    %s88 = sld [smem:[#allocation2]]
    %vm89 = vcmask 7168
    %v90 = vsel %vm89, %v85, 0.0
    %91 = vadd.xlane.f32.xlu0 %v90
    %v92 = vpop.xlane.xlu0 %91
    %v93 = vrot.slane %v92, 4
    %v94 = vadd.f32 %v92, %v93
    %v95 = vrot.slane %v94, 2
    %v96 = vadd.f32 %v94, %v95
    %v97 = vrot.slane %v96, 1
    %v98 = vadd.f32 %v96, %v97
    %s99 = vtos %v98
    %s100 = sadd.f32 %s88, %s99
    %s101 = scalar_lea.smem [#allocation2], 0
    %102 = sst [smem:[%s101]] %s100
    %s103 = sld [smem:[#allocation2 + $0x1]]
    %v104 = vsel %vm89, %v87, 0.0
    %105 = vadd.xlane.f32.xlu0 %v104
    %v106 = vpop.xlane.xlu0 %105
    %v107 = vrot.slane %v106, 4
    %v108 = vadd.f32 %v106, %v107
    %v109 = vrot.slane %v108, 2
    %v110 = vadd.f32 %v108, %v109
    %v111 = vrot.slane %v110, 1
    %v112 = vadd.f32 %v110, %v111
    %s113 = vtos %v112
    %s114 = sadd.f32 %s103, %s113
    %s115 = scalar_lea.smem [#allocation2], 1
    %116 = sst [smem:[%s115]] %s114
    // Predicated region
    $region30: #{tpu_custom_call.1} parent=1 // pred_check
      %p117 = pneg %p54
    $region31: #{tpu_custom_call.1} parent=1 // pred_check_branch
      %119 = sbr.rel (%p117) target = $region33
    $region32: #{tpu_custom_call.1} parent=1 // pred_region
      %s120 = sld [smem:[#allocation2]]
      %s121 = smul.f32 %s120, 0.125
      %s122 = sld [smem:[#allocation2 + $0x1]]
      %s123 = smul.f32 %s122, 0.125
      %s124 = scalar_lea.smem [#allocation10], 0
      %125 = sst [smem:[%s124]] %s121
      %s126 = scalar_lea.smem [#allocation12], 0
      %127 = sst [smem:[%s126]] %s123
      %s128 = smul.f32 %s121, 0.5
      %s129 = smul.f32 %s123, 0.5
      %s130 = sadd.f32 %s128, %s129
      %s131 = scalar_lea.smem [#allocation9], 0
      %132 = sst [smem:[%s131]] %s130
    $region33: #{tpu_custom_call.1} parent=1 // pred_fallthru
      _
    // Predicated region
    $region34: #{tpu_custom_call.1} parent=1 // pred_check
      _
    $region35: #{tpu_custom_call.1} parent=1 // pred_check_branch
      %134 = sbr.rel (0) target = $region37
    $region36: #{tpu_custom_call.1} parent=1 // pred_region
      %s136 = ssub.s32 16, 16
      %137 = vsyncadd [#allocation5], %s136
      %140 = dma.smem_to_hbm [#allocation9], 16, %s3, [#allocation5]
    $region37: #{tpu_custom_call.1} parent=1 // pred_fallthru
      _
    // Predicated region
    $region38: #{tpu_custom_call.1} parent=1 // pred_check
      _
    $region39: #{tpu_custom_call.1} parent=1 // pred_check_branch
      %142 = sbr.rel (0) target = $region41
    $region40: #{tpu_custom_call.1} parent=1 // pred_region
      %s144 = ssub.s32 16, 16
      %145 = vsyncadd [#allocation11], %s144
      %148 = dma.smem_to_hbm [#allocation10], 16, %s4, [#allocation11]
    $region41: #{tpu_custom_call.1} parent=1 // pred_fallthru
      _
    // Predicated region
    $region42: #{tpu_custom_call.1} parent=1 // pred_check
      _
    $region43: #{tpu_custom_call.1} parent=1 // pred_check_branch
      %150 = sbr.rel (0) target = $region45
    $region44: #{tpu_custom_call.1} parent=1 // pred_region
      %s152 = ssub.s32 16, 16
      %153 = vsyncadd [#allocation11], %s152
      %156 = dma.smem_to_hbm [#allocation12], 16, %s5, [#allocation11]
    $region45: #{tpu_custom_call.1} parent=1 // pred_fallthru
      _
    // Predicated region
    $region46: #{tpu_custom_call.1} parent=1 // pred_check
      _
    $region47: #{tpu_custom_call.1} parent=1 // pred_check_branch
      %158 = sbr.rel (0) target = $region49
    $region48: #{tpu_custom_call.1} parent=1 // pred_region
      %159 = dma.done [#allocation5], 16
    $region49: #{tpu_custom_call.1} parent=1 // pred_fallthru
      _
    // Predicated region
    $region50: #{tpu_custom_call.1} parent=1 // pred_check
      _
    $region51: #{tpu_custom_call.1} parent=1 // pred_check_branch
      %161 = sbr.rel (0) target = $region53
    $region52: #{tpu_custom_call.1} parent=1 // pred_region
      %162 = dma.done [#allocation11], 16
    $region53: #{tpu_custom_call.1} parent=1 // pred_fallthru
      _
    // Predicated region
    $region54: #{tpu_custom_call.1} parent=1 // pred_check
      _
    $region55: #{tpu_custom_call.1} parent=1 // pred_check_branch
      %164 = sbr.rel (0) target = $region57
    $region56: #{tpu_custom_call.1} parent=1 // pred_region
      %165 = dma.done [#allocation11], 16
    $region57: #{tpu_custom_call.1} parent=1 // pred_fallthru
      _
    %166 = sfence
    %167 = vsyncpa [#allocation4], 1
    %168 = vsyncpa [#allocation7], 1
    %169 = vsyncpa [#allocation5], 1
    %170 = vsyncpa [#allocation11], 1

</llo_original>
